<compile_context>
chip_gen: v7x
topology: tpu7x:2x2x1
jax: 0.10.0
libtpu: 0.0.40
codegen_flags: <defaults>
</compile_context>

<pallas_src>
import functools
import math

import jax
import jax.numpy as jnp
from jax.experimental import pallas as pl
from jax.experimental.pallas import tpu as pltpu

LN_EPS = 1e-6
_LANE = 128
_ROW_ALIGN = 16          # bf16 x-tiles pack 16 rows per sublane group


def _round_up(x, m):
    return ((x + m - 1) // m) * m


def _cdiv(a, b):
    return (a + b - 1) // b


def _largest_divisor_leq(n, cap):
    cap = max(1, min(n, int(cap)))
    for d in range(cap, 0, -1):
        if n % d == 0:
            return d
    return 1


def _chip_vmem_bytes():
    """Physical VMEM per TensorCore; conservative 64 MiB (v7x) if the query fails."""
    try:
        cap = int(pltpu.get_tpu_info().vmem_capacity_bytes)
        if cap > 0:
            return cap
    except Exception:
        pass
    return 64 << 20


def _albert_embed_kernel(x_ref, w_ref, pos_ref, g_ref, beta_ref, o_ref, *,
                         h_real, npos, pos_resident):
    """Produce one (tm, Hp) output tile.

    x_ref:    (tm, E)                    gathered token embeddings (bf16)
    w_ref:    (E, Hp)                    projection weight, zero-padded cols (bf16, resident)
    pos_ref:  (npos*tm, Hp) or (tm, Hp)  positional embedding + linear bias (f32)
    g_ref:    (1, Hp)                    LayerNorm gain  (zero in padded cols)
    beta_ref: (1, Hp)                    LayerNorm bias  (zero in padded cols)
    o_ref:    (tm, Hp)                   output tile (f32 or bf16)
    """
    tm = x_ref.shape[0]

    # Linear projection on the MXU (bf16 inputs, f32 accumulation).
    y = jnp.dot(x_ref[...], w_ref[...], preferred_element_type=jnp.float32)

    # Positional embedding (linear bias already folded in offline).
    if pos_resident and npos > 1:
        start = pl.multiple_of((pl.program_id(0) % npos) * tm, _ROW_ALIGN)
        y = y + pos_ref[pl.ds(start, tm), :]
    else:
        y = y + pos_ref[...]

    # Fused one-pass LayerNorm statistics.  Padded columns of y are exactly zero (the
    # weight and positional padded columns are zero), so plain sums over Hp equal the sums
    # over the real H columns -- no mask needed.
    s1 = jnp.sum(y, axis=-1, keepdims=True)
    s2 = jnp.sum(y * y, axis=-1, keepdims=True)
    mean = s1 * (1.0 / h_real)
    var = (s2 - mean * s1) * (1.0 / (h_real - 1))          # unbiased (matches torch .std())
    denom = jnp.sqrt(jnp.maximum(var, 0.0)) + LN_EPS

    # Reciprocal on the EUP (operand is only (tm, 1), off the VALU-hot (tm, Hp) path);
    # one Newton step restores ~f32 accuracy for negligible cost.
    inv = pl.reciprocal(denom, approx=True)
    inv = inv * (2.0 - denom * inv)

    # gamma/beta are zero in padded columns, so padded output columns stay exactly 0.
    o_ref[...] = ((y - mean) * (g_ref[...] * inv) + beta_ref[...]).astype(o_ref.dtype)


def albert_embedding_forward(sequence, params, *, tm_target=None,
                             matmul_dtype=jnp.bfloat16, out_dtype=jnp.float32):
    """sequence: (B, S) int32 token ids. Returns (B, S, H) in out_dtype.

    tm_target: rows per tile; None -> chip-derived (512 on v5e/v6e, VMEM-derived on v7x).
    out_dtype: float32 matches the PyTorch module; bfloat16 halves the dominant HBM write
               stream when the downstream encoder consumes bf16.
    """
    tok_table = params["token_table"]     # (V, E) float32
    w = params["token2_w"]                # (E, H)
    b = params["token2_b"]                # (H,)
    pe = params["pos_table"]              # (max_len, H)
    gamma = params["ln_gamma"]            # (H,)
    beta = params["ln_beta"]              # (H,)

    B, S = sequence.shape
    E = tok_table.shape[1]
    H = w.shape[1]

    # ---- chip-aware row-tile budget -------------------------------------------------------
    Hp = max(_LANE, _round_up(H, _LANE))            # lane-dense (unmasked) output stores
    out_itemsize = jnp.dtype(out_dtype).itemsize
    vmem_cap = _chip_vmem_bytes()

    if tm_target is None:
        # 128 MiB chips (v5e/v6e) take big row tiles; v7x (64 MiB/TC) is capped below.
        tm_target = 512 if vmem_cap >= (100 << 20) else 256

    # Per-row VMEM cost: double-buffered bf16 x tile + double-buffered out tile + f32 pos
    # row + ~3 live (tm, Hp) f32 temporaries in the matmul/LN epilogue.
    per_row = 2 * 2 * E + 2 * out_itemsize * Hp + 4 * Hp + 3 * 4 * Hp
    resident_bytes = 2 * E * Hp + 4 * 4 * Hp        # bf16 weight + f32 gamma/beta
    tm_cap = max(_ROW_ALIGN, (int(vmem_cap * 0.6) - resident_bytes) // per_row)
    tm_target = max(_ROW_ALIGN, (int(min(tm_target, tm_cap)) // _ROW_ALIGN) * _ROW_ALIGN)

    # ---- tile geometry (no padded batch rows; minimal padded sequence rows) ----------------
    Sp0 = _round_up(S, _ROW_ALIGN)
    if Sp0 <= tm_target:
        ts = Sp0
        Sp = Sp0
        bb = _largest_divisor_leq(B, tm_target // ts)     # whole sequences per tile
        if bb == B and B > 1:
            # Expose >= 2 grid steps so a v7x megacore can feed both TensorCores.
            bb = _largest_divisor_leq(B, max(1, B // 2))
    else:
        n_chunks = _cdiv(Sp0, tm_target)
        ts = _round_up(_cdiv(Sp0, n_chunks), _ROW_ALIGN)  # even split, e.g. S=384 -> ts=192
        Sp = n_chunks * ts
        bb = 1

    npos = Sp // ts                                  # distinct positional blocks per sequence
    tm = bb * ts                                     # rows per tile
    Mp = B * Sp
    n_tiles = Mp // tm

    # Keep the whole positional table resident in VMEM when it is small (it almost always
    # is); otherwise stream one f32 (tm, Hp) tile per step.
    pos_resident = (npos == 1) or (Sp * Hp * 4 <= min(16 << 20, vmem_cap // 8))

    # ---- wrapper glue (small, one-time) -----------------------------------------------------
    # Token gather stays as XLA glue; the table is pre-cast to bf16 at param-build time.
    tok_mm = params.get("token_table_bf16")
    if tok_mm is None or tok_mm.dtype != matmul_dtype:
        tok_mm = tok_table.astype(matmul_dtype)

    if Sp == S:
        seq_flat = sequence.reshape(-1)
    else:
        seq_flat = jnp.zeros((B, Sp), sequence.dtype).at[:, :S].set(sequence).reshape(-1)
    x = tok_mm[seq_flat]                                                    # (Mp, E) bf16

    if Hp == H:
        w_p = w.astype(matmul_dtype)
    else:
        w_p = jnp.zeros((E, Hp), matmul_dtype).at[:, :H].set(w.astype(matmul_dtype))

    # Positional table with the linear bias folded in (padded rows/cols stay zero).
    pos_arr = jnp.zeros((Sp, Hp), jnp.float32).at[:S, :H].set(pe[:S] + b[None, :])
    if npos == 1 and bb > 1:
        pos_arr = jnp.tile(pos_arr, (bb, 1))                                # (tm, Hp)

    g_p = jnp.zeros((1, Hp), jnp.float32).at[:, :H].set(gamma[None, :])
    beta_p = jnp.zeros((1, Hp), jnp.float32).at[:, :H].set(beta[None, :])

    # ---- VMEM limit: actual footprint + headroom, capped below physical capacity -----------
    pos_rows = pos_arr.shape[0] if pos_resident else 2 * tm
    est = (2 * tm * E * 2                       # x tiles (bf16, double-buffered)
           + 2 * E * Hp * 2                     # weight (2x covers the non-Buffered fallback)
           + pos_rows * Hp * 4                  # positional table / tiles
           + 2 * tm * Hp * out_itemsize         # output tiles
           + 3 * tm * Hp * 4                    # live f32 temporaries (y, y*y, epilogue)
           + 4 * Hp * 4)                        # gamma / beta
    vmem_limit = int(min(max(int(1.25 * est), 32 << 20), int(vmem_cap * 0.9)))

    kernel = functools.partial(_albert_embed_kernel, h_real=H, npos=npos,
                               pos_resident=pos_resident)

    def _run(single_buffer):
        def _resident_spec(shape):
            if single_buffer:
                # Constant-index blocks do not need a double buffer -> halve their VMEM.
                return pl.BlockSpec(shape, lambda i: (0, 0),
                                    pipeline_mode=pl.Buffered(1))
            return pl.BlockSpec(shape, lambda i: (0, 0))

        if pos_resident:
            pos_spec = _resident_spec(pos_arr.shape)
        else:
            pos_spec = pl.BlockSpec((tm, Hp), lambda i, _n=npos: (i % _n, 0))

        return pl.pallas_call(
            kernel,
            out_shape=jax.ShapeDtypeStruct((Mp, Hp), out_dtype),
            grid_spec=pltpu.PrefetchScalarGridSpec(
                num_scalar_prefetch=0,
                grid=(n_tiles,),
                in_specs=[
                    pl.BlockSpec((tm, E), lambda i: (i, 0)),   # token embedding tile (bf16)
                    _resident_spec((E, Hp)),                   # weight (resident)
                    pos_spec,                                  # positional (+bias)
                    _resident_spec((1, Hp)),                   # LN gamma
                    _resident_spec((1, Hp)),                   # LN beta
                ],
                out_specs=pl.BlockSpec((tm, Hp), lambda i: (i, 0)),
            ),
            compiler_params=pltpu.CompilerParams(
                dimension_semantics=("parallel",),             # shards across TCs on v7x
                vmem_limit_bytes=vmem_limit,
            ),
        )(x, w_p, pos_arr, g_p, beta_p)

    try:
        out = _run(single_buffer=True)
    except Exception:
        # Fallback for runtimes that reject pipeline_mode=pl.Buffered(1) on pallas_call.
        out = _run(single_buffer=False)

    return out.reshape(B, Sp, Hp)[:, :S, :H]


def make_params(key, vocab_size, embed_size, max_len, hidden):
    k_tok, k_w, k_b = jax.random.split(key, 3)

    # nn.Embedding(vocab, embed, padding_idx=0): N(0,1) init, row 0 zeroed.
    token_table = jax.random.normal(k_tok, (vocab_size, embed_size), jnp.float32)
    token_table = token_table.at[0].set(0.0)

    # nn.Linear(embed, hidden): uniform(+-1/sqrt(embed)) init.
    bound = 1.0 / math.sqrt(embed_size)
    token2_w = jax.random.uniform(k_w, (embed_size, hidden), jnp.float32, -bound, bound)
    token2_b = jax.random.uniform(k_b, (hidden,), jnp.float32, -bound, bound)

    # Sinusoidal positional embedding table (max_len, hidden).
    position = jnp.arange(max_len, dtype=jnp.float32)[:, None]
    div_term = jnp.exp(
        jnp.arange(0, hidden, 2, dtype=jnp.float32) * -(math.log(10000.0) / hidden))
    pe = jnp.zeros((max_len, hidden), jnp.float32)
    pe = pe.at[:, 0::2].set(jnp.sin(position * div_term))
    pe = pe.at[:, 1::2].set(jnp.cos(position * div_term))

    return {
        "token_table": token_table,
        "token_table_bf16": token_table.astype(jnp.bfloat16),  # pre-cast once for the MXU
        "token2_w": token2_w,
        "token2_b": token2_b,
        "pos_table": pe,
        "ln_gamma": jnp.ones((hidden,), jnp.float32),          # LayerNorm a_2
        "ln_beta": jnp.zeros((hidden,), jnp.float32),          # LayerNorm b_2
    }


def reference_forward(sequence, params, matmul_dtype=jnp.bfloat16):
    """Pure-JAX reference mirroring the PyTorch module.

    The matmul inputs are cast to the same dtype as the kernel's MXU path so the comparison
    isolates kernel correctness (accumulation and LayerNorm stay f32).
    """
    S = sequence.shape[1]
    H = params["token2_w"].shape[1]
    x = params["token_table"].astype(matmul_dtype)[sequence]                 # (B,S,E)
    y = jnp.dot(x, params["token2_w"].astype(matmul_dtype),
                preferred_element_type=jnp.float32)                          # (B,S,H)
    y = y + params["token2_b"][None, None, :]
    y = y + params["pos_table"][:S][None, :, :]
    mean = y.mean(-1, keepdims=True)
    diff = y - mean
    std = jnp.sqrt(jnp.sum(diff * diff, -1, keepdims=True) / (H - 1))        # unbiased
    return params["ln_gamma"] * diff / (std + LN_EPS) + params["ln_beta"]


if __name__ == "__main__":
    vocab_size, embed_size, max_len, hidden = 50, 16, 16, 32
    B, S = 2, 8

    key = jax.random.PRNGKey(0)
    k_params, k_seq = jax.random.split(key)
    params = make_params(k_params, vocab_size, embed_size, max_len, hidden)
    sequence = jax.random.randint(k_seq, (B, S), 0, vocab_size, dtype=jnp.int32)

    ref = reference_forward(sequence, params)

    # Default path: f32 output (exact PyTorch-module semantics).
    out = albert_embedding_forward(sequence, params)
    out = jax.block_until_ready(out)
    assert out.shape == (B, S, hidden)
    assert out.dtype == jnp.float32
    assert jnp.allclose(out, ref, atol=1e-3, rtol=1e-3), "f32 output mismatch vs reference"

    # Optional bf16-output fast path (halves the dominant HBM write stream).
    out_bf16 = albert_embedding_forward(sequence, params, out_dtype=jnp.bfloat16)
    out_bf16 = jax.block_until_ready(out_bf16)
    assert out_bf16.shape == (B, S, hidden)
    assert out_bf16.dtype == jnp.bfloat16
    assert jnp.allclose(out_bf16.astype(jnp.float32), ref, atol=3e-2, rtol=3e-2), \
        "bf16 output mismatch vs reference"

    print("KERNEL_OK")
</pallas_src>

<mosaic_0001>
module attributes {stable_mosaic.version = 11 : i64} {
  func.func @_albert_embed_kernel(%arg0: i32, %arg1: memref<16x16xbf16, #tpu.memory_space<vmem>>, %arg2: memref<16x128xbf16, #tpu.memory_space<vmem>>, %arg3: memref<16x128xf32, #tpu.memory_space<vmem>>, %arg4: memref<1x128xf32, #tpu.memory_space<vmem>>, %arg5: memref<1x128xf32, #tpu.memory_space<vmem>>, %arg6: memref<16x128xf32, #tpu.memory_space<vmem>>) attributes {dimension_semantics = [#tpu.dimension_semantics<parallel>], iteration_bounds = array<i64: 2>, scalar_prefetch = 0 : i64, scratch_operands = 0 : i64, tpu.core_type = #tpu.core_type<tc>, window_params = [{transform_indices = @transform_0, window_bounds = array<i64: 16, 16>}, {pipeline_mode = #tpu.pipeline_mode<synchronous>, transform_indices = @transform_1, window_bounds = array<i64: 16, 128>}, {pipeline_mode = #tpu.pipeline_mode<synchronous>, transform_indices = @transform_2, window_bounds = array<i64: 16, 128>}, {pipeline_mode = #tpu.pipeline_mode<synchronous>, transform_indices = @transform_3, window_bounds = array<i64: 1, 128>}, {pipeline_mode = #tpu.pipeline_mode<synchronous>, transform_indices = @transform_4, window_bounds = array<i64: 1, 128>}, {transform_indices = @transform_5, window_bounds = array<i64: 16, 128>}]} {
    %c0 = arith.constant 0 : index
    %c0_0 = arith.constant 0 : index
    %0 = vector.load %arg1[%c0, %c0_0] : memref<16x16xbf16, #tpu.memory_space<vmem>>, vector<16x16xbf16>
    %c0_1 = arith.constant 0 : index
    %c0_2 = arith.constant 0 : index
    %1 = vector.load %arg2[%c0_1, %c0_2] : memref<16x128xbf16, #tpu.memory_space<vmem>>, vector<16x128xbf16>
    %cst = arith.constant dense<0.000000e+00> : vector<16x128xf32>
    %2 = tpu.matmul %0, %1, %cst {dimension_numbers = #tpu.dot_dimension_numbers<[1], [0], [0], [1], [0, 0, 1, 1], [], []>} : vector<16x16xbf16>, vector<16x128xbf16>, vector<16x128xf32> -> vector<16x128xf32>
    %c0_3 = arith.constant 0 : index
    %c0_4 = arith.constant 0 : index
    %3 = vector.load %arg3[%c0_3, %c0_4] : memref<16x128xf32, #tpu.memory_space<vmem>>, vector<16x128xf32>
    %4 = arith.addf %2, %3 : vector<16x128xf32>
    %cst_5 = arith.constant dense<0.000000e+00> : vector<16xf32>
    %5 = vector.multi_reduction <add>, %4, %cst_5 [1] : vector<16x128xf32> to vector<16xf32>
    %6 = vector.shape_cast %5 : vector<16xf32> to vector<16x1xf32>
    %7 = arith.mulf %4, %4 : vector<16x128xf32>
    %cst_6 = arith.constant dense<0.000000e+00> : vector<16xf32>
    %8 = vector.multi_reduction <add>, %7, %cst_6 [1] : vector<16x128xf32> to vector<16xf32>
    %9 = vector.shape_cast %8 : vector<16xf32> to vector<16x1xf32>
    %cst_7 = arith.constant 3.125000e-02 : f32
    %10 = vector.broadcast %cst_7 : f32 to vector<16x1xf32>
    %11 = arith.mulf %6, %10 : vector<16x1xf32>
    %12 = arith.mulf %11, %6 : vector<16x1xf32>
    %13 = arith.subf %9, %12 : vector<16x1xf32>
    %cst_8 = arith.constant 0.0322580636 : f32
    %14 = vector.broadcast %cst_8 : f32 to vector<16x1xf32>
    %15 = arith.mulf %13, %14 : vector<16x1xf32>
    %cst_9 = arith.constant 0.000000e+00 : f32
    %16 = vector.broadcast %cst_9 : f32 to vector<16x1xf32>
    %17 = arith.maximumf %15, %16 : vector<16x1xf32>
    %18 = math.sqrt %17 : vector<16x1xf32>
    %cst_10 = arith.constant 9.99999997E-7 : f32
    %19 = vector.broadcast %cst_10 : f32 to vector<16x1xf32>
    %20 = arith.addf %18, %19 : vector<16x1xf32>
    %21 = tpu.reciprocal %20 {approx = true} : vector<16x1xf32> -> vector<16x1xf32>
    %22 = arith.mulf %20, %21 : vector<16x1xf32>
    %cst_11 = arith.constant 2.000000e+00 : f32
    %23 = vector.broadcast %cst_11 : f32 to vector<16x1xf32>
    %24 = arith.subf %23, %22 : vector<16x1xf32>
    %25 = arith.mulf %21, %24 : vector<16x1xf32>
    %26 = vector.broadcast %11 : vector<16x1xf32> to vector<16x128xf32>
    %27 = arith.subf %4, %26 : vector<16x128xf32>
    %c0_12 = arith.constant 0 : index
    %c0_13 = arith.constant 0 : index
    %28 = vector.load %arg4[%c0_12, %c0_13] : memref<1x128xf32, #tpu.memory_space<vmem>>, vector<1x128xf32>
    %29 = vector.broadcast %28 : vector<1x128xf32> to vector<16x128xf32>
    %30 = vector.broadcast %25 : vector<16x1xf32> to vector<16x128xf32>
    %31 = arith.mulf %29, %30 : vector<16x128xf32>
    %32 = arith.mulf %27, %31 : vector<16x128xf32>
    %c0_14 = arith.constant 0 : index
    %c0_15 = arith.constant 0 : index
    %33 = vector.load %arg5[%c0_14, %c0_15] : memref<1x128xf32, #tpu.memory_space<vmem>>, vector<1x128xf32>
    %34 = vector.broadcast %33 : vector<1x128xf32> to vector<16x128xf32>
    %35 = arith.addf %32, %34 : vector<16x128xf32>
    %c0_16 = arith.constant 0 : index
    %c0_17 = arith.constant 0 : index
    %36 = vector.load %arg6[%c0_16, %c0_17] : memref<16x128xf32, #tpu.memory_space<vmem>>, vector<16x128xf32>
    tpu.vector_store %arg6[%c0_16, %c0_17], %35 {strides = array<i32>} : memref<16x128xf32, #tpu.memory_space<vmem>>, vector<16x128xf32>,
    return
  }
  func.func @transform_0(%arg0: i32) -> (i32, i32) {
    %c0_i32 = arith.constant 0 : i32
    %c0_i32_0 = arith.constant 0 : i32
    return %arg0, %c0_i32 : i32, i32
  }
  func.func @transform_1(%arg0: i32) -> (i32, i32) {
    %c0_i32 = arith.constant 0 : i32
    %c0_i32_0 = arith.constant 0 : i32
    %c0_i32_1 = arith.constant 0 : i32
    return %c0_i32, %c0_i32_0 : i32, i32
  }
  func.func @transform_2(%arg0: i32) -> (i32, i32) {
    %c0_i32 = arith.constant 0 : i32
    %c0_i32_0 = arith.constant 0 : i32
    %c0_i32_1 = arith.constant 0 : i32
    return %c0_i32, %c0_i32_0 : i32, i32
  }
  func.func @transform_3(%arg0: i32) -> (i32, i32) {
    %c0_i32 = arith.constant 0 : i32
    %c0_i32_0 = arith.constant 0 : i32
    %c0_i32_1 = arith.constant 0 : i32
    return %c0_i32, %c0_i32_0 : i32, i32
  }
  func.func @transform_4(%arg0: i32) -> (i32, i32) {
    %c0_i32 = arith.constant 0 : i32
    %c0_i32_0 = arith.constant 0 : i32
    %c0_i32_1 = arith.constant 0 : i32
    return %c0_i32, %c0_i32_0 : i32, i32
  }
  func.func @transform_5(%arg0: i32) -> (i32, i32) {
    %c0_i32 = arith.constant 0 : i32
    %c0_i32_0 = arith.constant 0 : i32
    return %arg0, %c0_i32 : i32, i32
  }
}

module attributes {stable_mosaic.version = 11 : i64} {
  func.func @_albert_embed_kernel(%arg0: i32, %arg1: memref<16x16xbf16, #tpu.memory_space<vmem>>, %arg2: memref<16x128xbf16, #tpu.memory_space<vmem>>, %arg3: memref<16x128xf32, #tpu.memory_space<vmem>>, %arg4: memref<1x128xf32, #tpu.memory_space<vmem>>, %arg5: memref<1x128xf32, #tpu.memory_space<vmem>>, %arg6: memref<16x128xf32, #tpu.memory_space<vmem>>) attributes {dimension_semantics = [#tpu.dimension_semantics<parallel>], iteration_bounds = array<i64: 2>, scalar_prefetch = 0 : i64, scratch_operands = 0 : i64, tpu.core_type = #tpu.core_type<tc>, window_params = [{transform_indices = @transform_0, window_bounds = array<i64: 16, 16>}, {pipeline_mode = #tpu.pipeline_mode<synchronous>, transform_indices = @transform_1, window_bounds = array<i64: 16, 128>}, {pipeline_mode = #tpu.pipeline_mode<synchronous>, transform_indices = @transform_2, window_bounds = array<i64: 16, 128>}, {pipeline_mode = #tpu.pipeline_mode<synchronous>, transform_indices = @transform_3, window_bounds = array<i64: 1, 128>}, {pipeline_mode = #tpu.pipeline_mode<synchronous>, transform_indices = @transform_4, window_bounds = array<i64: 1, 128>}, {transform_indices = @transform_5, window_bounds = array<i64: 16, 128>}]} {
    %c0 = arith.constant 0 : index
    %c0_0 = arith.constant 0 : index
    %0 = vector.load %arg1[%c0, %c0_0] : memref<16x16xbf16, #tpu.memory_space<vmem>>, vector<16x16xbf16>
    %c0_1 = arith.constant 0 : index
    %c0_2 = arith.constant 0 : index
    %1 = vector.load %arg2[%c0_1, %c0_2] : memref<16x128xbf16, #tpu.memory_space<vmem>>, vector<16x128xbf16>
    %cst = arith.constant dense<0.000000e+00> : vector<16x128xf32>
    %2 = tpu.matmul %0, %1, %cst {dimension_numbers = #tpu.dot_dimension_numbers<[1], [0], [0], [1], [0, 0, 1, 1], [], []>} : vector<16x16xbf16>, vector<16x128xbf16>, vector<16x128xf32> -> vector<16x128xf32>
    %c0_3 = arith.constant 0 : index
    %c0_4 = arith.constant 0 : index
    %3 = vector.load %arg3[%c0_3, %c0_4] : memref<16x128xf32, #tpu.memory_space<vmem>>, vector<16x128xf32>
    %4 = arith.addf %2, %3 : vector<16x128xf32>
    %cst_5 = arith.constant dense<0.000000e+00> : vector<16xf32>
    %5 = vector.multi_reduction <add>, %4, %cst_5 [1] : vector<16x128xf32> to vector<16xf32>
    %6 = vector.shape_cast %5 : vector<16xf32> to vector<16x1xf32>
    %7 = arith.mulf %4, %4 : vector<16x128xf32>
    %cst_6 = arith.constant dense<0.000000e+00> : vector<16xf32>
    %8 = vector.multi_reduction <add>, %7, %cst_6 [1] : vector<16x128xf32> to vector<16xf32>
    %9 = vector.shape_cast %8 : vector<16xf32> to vector<16x1xf32>
    %cst_7 = arith.constant 3.125000e-02 : f32
    %10 = vector.broadcast %cst_7 : f32 to vector<16x1xf32>
    %11 = arith.mulf %6, %10 : vector<16x1xf32>
    %12 = arith.mulf %11, %6 : vector<16x1xf32>
    %13 = arith.subf %9, %12 : vector<16x1xf32>
    %cst_8 = arith.constant 0.0322580636 : f32
    %14 = vector.broadcast %cst_8 : f32 to vector<16x1xf32>
    %15 = arith.mulf %13, %14 : vector<16x1xf32>
    %cst_9 = arith.constant 0.000000e+00 : f32
    %16 = vector.broadcast %cst_9 : f32 to vector<16x1xf32>
    %17 = arith.maximumf %15, %16 : vector<16x1xf32>
    %18 = math.sqrt %17 : vector<16x1xf32>
    %cst_10 = arith.constant 9.99999997E-7 : f32
    %19 = vector.broadcast %cst_10 : f32 to vector<16x1xf32>
    %20 = arith.addf %18, %19 : vector<16x1xf32>
    %21 = tpu.reciprocal %20 {approx = true} : vector<16x1xf32> -> vector<16x1xf32>
    %22 = arith.mulf %20, %21 : vector<16x1xf32>
    %cst_11 = arith.constant 2.000000e+00 : f32
    %23 = vector.broadcast %cst_11 : f32 to vector<16x1xf32>
    %24 = arith.subf %23, %22 : vector<16x1xf32>
    %25 = arith.mulf %21, %24 : vector<16x1xf32>
    %26 = vector.broadcast %11 : vector<16x1xf32> to vector<16x128xf32>
    %27 = arith.subf %4, %26 : vector<16x128xf32>
    %c0_12 = arith.constant 0 : index
    %c0_13 = arith.constant 0 : index
    %28 = vector.load %arg4[%c0_12, %c0_13] : memref<1x128xf32, #tpu.memory_space<vmem>>, vector<1x128xf32>
    %29 = vector.broadcast %28 : vector<1x128xf32> to vector<16x128xf32>
    %30 = vector.broadcast %25 : vector<16x1xf32> to vector<16x128xf32>
    %31 = arith.mulf %29, %30 : vector<16x128xf32>
    %32 = arith.mulf %27, %31 : vector<16x128xf32>
    %c0_14 = arith.constant 0 : index
    %c0_15 = arith.constant 0 : index
    %33 = vector.load %arg5[%c0_14, %c0_15] : memref<1x128xf32, #tpu.memory_space<vmem>>, vector<1x128xf32>
    %34 = vector.broadcast %33 : vector<1x128xf32> to vector<16x128xf32>
    %35 = arith.addf %32, %34 : vector<16x128xf32>
    %c0_16 = arith.constant 0 : index
    %c0_17 = arith.constant 0 : index
    %36 = vector.load %arg6[%c0_16, %c0_17] : memref<16x128xf32, #tpu.memory_space<vmem>>, vector<16x128xf32>
    tpu.vector_store %arg6[%c0_16, %c0_17], %35 {strides = array<i32>} : memref<16x128xf32, #tpu.memory_space<vmem>>, vector<16x128xf32>,
    return
  }
  func.func @transform_0(%arg0: i32) -> (i32, i32) {
    %c0_i32 = arith.constant 0 : i32
    %c0_i32_0 = arith.constant 0 : i32
    return %arg0, %c0_i32 : i32, i32
  }
  func.func @transform_1(%arg0: i32) -> (i32, i32) {
    %c0_i32 = arith.constant 0 : i32
    %c0_i32_0 = arith.constant 0 : i32
    %c0_i32_1 = arith.constant 0 : i32
    return %c0_i32, %c0_i32_0 : i32, i32
  }
  func.func @transform_2(%arg0: i32) -> (i32, i32) {
    %c0_i32 = arith.constant 0 : i32
    %c0_i32_0 = arith.constant 0 : i32
    %c0_i32_1 = arith.constant 0 : i32
    return %c0_i32, %c0_i32_0 : i32, i32
  }
  func.func @transform_3(%arg0: i32) -> (i32, i32) {
    %c0_i32 = arith.constant 0 : i32
    %c0_i32_0 = arith.constant 0 : i32
    %c0_i32_1 = arith.constant 0 : i32
    return %c0_i32, %c0_i32_0 : i32, i32
  }
  func.func @transform_4(%arg0: i32) -> (i32, i32) {
    %c0_i32 = arith.constant 0 : i32
    %c0_i32_0 = arith.constant 0 : i32
    %c0_i32_1 = arith.constant 0 : i32
    return %c0_i32, %c0_i32_0 : i32, i32
  }
  func.func @transform_5(%arg0: i32) -> (i32, i32) {
    %c0_i32 = arith.constant 0 : i32
    %c0_i32_0 = arith.constant 0 : i32
    return %arg0, %c0_i32 : i32, i32
  }
}

</mosaic_0001>

<llo_original>
// kernel: tpu_custom_call.1
$region0: #{tpu_custom_call.1}
  #allocation0 [shape = 'u32[]', space=smem, size = 0x4, offset = 0x4, fixed_abs, tag = 'smem constant byte address 0x4 - core index']
  #allocation1 [shape = 'u32[144,128]{1,0:T(1,128)}', space=vmem, size = 0x12000, scoped, tag = 'internal scratch']
  %s0 = inlined_call_operand.vmem [shape: bf16[32,16], index: 0, kind: input, shape index: {}]
  %s1 = inlined_call_operand.vmem [shape: bf16[16,128], index: 1, kind: input, shape index: {}]
  %s2 = inlined_call_operand.vmem [shape: f32[16,128], index: 2, kind: input, shape index: {}]
  %s3 = inlined_call_operand.vmem [shape: f32[1,128], index: 3, kind: input, shape index: {}]
  %s4 = inlined_call_operand.vmem [shape: f32[1,128], index: 4, kind: input, shape index: {}]
  %s5 = inlined_call_operand.hbm [shape: f32[32,128], index: 5, kind: output, shape index: {}]
  %s6 = sld [smem:[#allocation0]]
  $region53: #{tpu_custom_call.1} parent=0
    _
  %s8 = ssub.s32 1, %s6
  %s9 = scalar_select 0, %s8, %s6
  $region1: #{tpu_custom_call.1} parent=0
    #allocation2 [shape = 'u8[16384]{0}', space=vmem, size = 0x4000, scoped, tag = 'output window, operand 0']
    #allocation3 [shape = 's32[2]{0}', space=sflag, size = 0x8, scoped, tag = 'scoped memory for tpu_custom_call.1']
    %10 = vsyncpa [#allocation3], 0
    %s11 = scalar_lea.sflag [#allocation3], 1
    %12 = vsyncpa %s11, 0
    loop: start=0, step=1, limit=4
    $region2: #{tpu_custom_call.1} parent=1 // loop_pre_header
      _
    $region3: #{tpu_custom_call.1} parent=1 // loop_header
      %s14 = sphi 0, %s18
      %p15 = scmp.ge.s32.totalorder %s14, 4
      %s24 = sphi 0, %s26
      %s27 = sphi 0, %s24
      %s28 = sphi 0, %s27
      %s44 = sphi 0, %s28
      %s48 = sphi 0, %s48
      %s50 = sphi 0, %s48
      %s51 = sphi 0, %s50
      %s65 = sphi 0, %s51
      %s69 = sphi 0, %s69
      %s71 = sphi 0, %s69
      %s72 = sphi 0, %s71
      %s86 = sphi 0, %s72
      %s90 = sphi 0, %s90
      %s92 = sphi 0, %s90
      %s93 = sphi 0, %s92
      %s107 = sphi 0, %s93
      %s111 = sphi 0, %s111
      %s113 = sphi 0, %s111
      %s114 = sphi 0, %s113
      %s128 = sphi 0, %s114
      %s134 = sphi 0, %s136
      %s137 = sphi 0, %s134
      %s138 = sphi 0, %s137
      %s154 = sphi 0, %s138
    $region4: #{tpu_custom_call.1} parent=1 // loop_header_branch
      %17 = sbr.rel (%p15) target = $region8
    $region5: #{tpu_custom_call.1} parent=1 // loop_body
      %s19 = ssub.s32 %s14, 1
      %s20 = ssub.s32 %s14, 2
      %s21 = sadd.s32 %s14, 1
      %s22 = ssub.s32 %s14, %s21
      %p23 = scmp.eq.s32.totalorder %s22, 0
      %s25 = sadd.s32 %s24, 1
      %s26 = scalar_select %p23, %s24, %s25
      %p29 = pneg %p23
      %p30 = scmp.eq.s32.totalorder %s14, 1
      %p31 = por %p29, %p30
      %p32 = scmp.ne.s32.totalorder %s24, %s27
      %p33 = scmp.eq.s32.totalorder %s14, 0
      %p34 = por %p32, %p33
      %p35 = scmp.ne.s32.totalorder %s24, %s27
      %p36 = scmp.eq.s32.totalorder %s19, 1
      %p37 = por %p35, %p36
      %p38 = scmp.ne.s32.totalorder %s27, %s28
      %p39 = scmp.eq.s32.totalorder %s19, 0
      %p40 = por %p38, %p39
      %p41 = scmp.ne.s32.totalorder %s27, %s28
      %p42 = scmp.eq.s32.totalorder %s20, 1
      %p43 = por %p41, %p42
      %p45 = scmp.ne.s32.totalorder %s28, %s44
      %p46 = scmp.eq.s32.totalorder %s20, 0
      %p47 = por %p45, %p46
      %s49 = sadd.s32 %s48, 1
      %p52 = scmp.eq.s32.totalorder %s14, 1
      %p53 = scmp.ne.s32.totalorder %s48, %s50
      %p54 = scmp.eq.s32.totalorder %s14, 0
      %p55 = por %p53, %p54
      %p56 = scmp.ne.s32.totalorder %s48, %s50
      %p57 = scmp.eq.s32.totalorder %s19, 1
      %p58 = por %p56, %p57
      %p59 = scmp.ne.s32.totalorder %s50, %s51
      %p60 = scmp.eq.s32.totalorder %s19, 0
      %p61 = por %p59, %p60
      %p62 = scmp.ne.s32.totalorder %s50, %s51
      %p63 = scmp.eq.s32.totalorder %s20, 1
      %p64 = por %p62, %p63
      %p66 = scmp.ne.s32.totalorder %s51, %s65
      %p67 = scmp.eq.s32.totalorder %s20, 0
      %p68 = por %p66, %p67
      %s70 = sadd.s32 %s69, 1
      %p73 = scmp.eq.s32.totalorder %s14, 1
      %p74 = scmp.ne.s32.totalorder %s69, %s71
      %p75 = scmp.eq.s32.totalorder %s14, 0
      %p76 = por %p74, %p75
      %p77 = scmp.ne.s32.totalorder %s69, %s71
      %p78 = scmp.eq.s32.totalorder %s19, 1
      %p79 = por %p77, %p78
      %p80 = scmp.ne.s32.totalorder %s71, %s72
      %p81 = scmp.eq.s32.totalorder %s19, 0
      %p82 = por %p80, %p81
      %p83 = scmp.ne.s32.totalorder %s71, %s72
      %p84 = scmp.eq.s32.totalorder %s20, 1
      %p85 = por %p83, %p84
      %p87 = scmp.ne.s32.totalorder %s72, %s86
      %p88 = scmp.eq.s32.totalorder %s20, 0
      %p89 = por %p87, %p88
      %s91 = sadd.s32 %s90, 1
      %p94 = scmp.eq.s32.totalorder %s14, 1
      %p95 = scmp.ne.s32.totalorder %s90, %s92
      %p96 = scmp.eq.s32.totalorder %s14, 0
      %p97 = por %p95, %p96
      %p98 = scmp.ne.s32.totalorder %s90, %s92
      %p99 = scmp.eq.s32.totalorder %s19, 1
      %p100 = por %p98, %p99
      %p101 = scmp.ne.s32.totalorder %s92, %s93
      %p102 = scmp.eq.s32.totalorder %s19, 0
      %p103 = por %p101, %p102
      %p104 = scmp.ne.s32.totalorder %s92, %s93
      %p105 = scmp.eq.s32.totalorder %s20, 1
      %p106 = por %p104, %p105
      %p108 = scmp.ne.s32.totalorder %s93, %s107
      %p109 = scmp.eq.s32.totalorder %s20, 0
      %p110 = por %p108, %p109
      %s112 = sadd.s32 %s111, 1
      %p115 = scmp.eq.s32.totalorder %s14, 1
      %p116 = scmp.ne.s32.totalorder %s111, %s113
      %p117 = scmp.eq.s32.totalorder %s14, 0
      %p118 = por %p116, %p117
      %p119 = scmp.ne.s32.totalorder %s111, %s113
      %p120 = scmp.eq.s32.totalorder %s19, 1
      %p121 = por %p119, %p120
      %p122 = scmp.ne.s32.totalorder %s113, %s114
      %p123 = scmp.eq.s32.totalorder %s19, 0
      %p124 = por %p122, %p123
      %p125 = scmp.ne.s32.totalorder %s113, %s114
      %p126 = scmp.eq.s32.totalorder %s20, 1
      %p127 = por %p125, %p126
      %p129 = scmp.ne.s32.totalorder %s114, %s128
      %p130 = scmp.eq.s32.totalorder %s20, 0
      %p131 = por %p129, %p130
      %s132 = ssub.s32 %s14, %s21
      %p133 = scmp.eq.s32.totalorder %s132, 0
      %s135 = sadd.s32 %s134, 1
      %s136 = scalar_select %p133, %s134, %s135
      %p139 = pneg %p133
      %p140 = scmp.eq.s32.totalorder %s14, 1
      %p141 = por %p139, %p140
      %p142 = scmp.ne.s32.totalorder %s134, %s137
      %p143 = scmp.eq.s32.totalorder %s14, 0
      %p144 = por %p142, %p143
      %p145 = scmp.ne.s32.totalorder %s134, %s137
      %p146 = scmp.eq.s32.totalorder %s19, 1
      %p147 = por %p145, %p146
      %p148 = scmp.ne.s32.totalorder %s137, %s138
      %p149 = scmp.eq.s32.totalorder %s19, 0
      %p150 = por %p148, %p149
      %p151 = scmp.ne.s32.totalorder %s137, %s138
      %p152 = scmp.eq.s32.totalorder %s20, 1
      %p153 = por %p151, %p152
      %p155 = scmp.ne.s32.totalorder %s138, %s154
      %p156 = scmp.eq.s32.totalorder %s20, 0
      %p157 = por %p155, %p156
      %p158 = scmp.le.s32.totalorder 1, %s14
      %p159 = scmp.lt.s32.totalorder %s14, 3
      %p160 = pnand %p158, %p159
      %p161 = pneg %p160
      // Predicated region
      $region9: #{tpu_custom_call.1} parent=5 // pred_check
        _
      $region10: #{tpu_custom_call.1} parent=5 // pred_check_branch
        %163 = sbr.rel (%p160) target = $region12
      $region11: #{tpu_custom_call.1} parent=5 // pred_region
        %s164 = ssub.s32 %s14, 1
        // Predicated region
        $region13: #{tpu_custom_call.1} parent=11 // pred_check
          %p165 = pneg %p61
        $region14: #{tpu_custom_call.1} parent=11 // pred_check_branch
          %167 = sbr.rel (%p165) target = $region16
        $region15: #{tpu_custom_call.1} parent=11 // pred_region
          _
        $region16: #{tpu_custom_call.1} parent=11 // pred_fallthru
          _
        // Predicated region
        $region17: #{tpu_custom_call.1} parent=11 // pred_check
          %p168 = pneg %p82
        $region18: #{tpu_custom_call.1} parent=11 // pred_check_branch
          %170 = sbr.rel (%p168) target = $region20
        $region19: #{tpu_custom_call.1} parent=11 // pred_region
          _
        $region20: #{tpu_custom_call.1} parent=11 // pred_fallthru
          _
        // Predicated region
        $region21: #{tpu_custom_call.1} parent=11 // pred_check
          %p171 = pneg %p103
        $region22: #{tpu_custom_call.1} parent=11 // pred_check_branch
          %173 = sbr.rel (%p171) target = $region24
        $region23: #{tpu_custom_call.1} parent=11 // pred_region
          _
        $region24: #{tpu_custom_call.1} parent=11 // pred_fallthru
          _
        // Predicated region
        $region25: #{tpu_custom_call.1} parent=11 // pred_check
          %p174 = pneg %p124
        $region26: #{tpu_custom_call.1} parent=11 // pred_check_branch
          %176 = sbr.rel (%p174) target = $region28
        $region27: #{tpu_custom_call.1} parent=11 // pred_region
          _
        $region28: #{tpu_custom_call.1} parent=11 // pred_fallthru
          _
      $region12: #{tpu_custom_call.1} parent=5 // pred_fallthru
        _
      %p177 = scmp.lt.s32.totalorder %s14, 2
      // Predicated region
      $region29: #{tpu_custom_call.1} parent=5 // pred_check
        %p178 = pneg %p177
      $region30: #{tpu_custom_call.1} parent=5 // pred_check_branch
        %180 = sbr.rel (%p178) target = $region32
      $region31: #{tpu_custom_call.1} parent=5 // pred_region
        // Predicated region
        $region33: #{tpu_custom_call.1} parent=31 // pred_check
          %p181 = pneg %p34
        $region34: #{tpu_custom_call.1} parent=31 // pred_check_branch
          %183 = sbr.rel (%p181) target = $region36
        $region35: #{tpu_custom_call.1} parent=31 // pred_region
          %s184 = smul.u32 2, %s14
          %p185 = scmp.lt.s32.totalorder %s184, 3
          %s186 = scalar_select %p185, %s184, 3
          %s187 = smul.addr %s186, 4
          %s188 = scalar_lea.vmem %s0, %s187
          %s189 = smul.u32 2, %s14
        $region36: #{tpu_custom_call.1} parent=31 // pred_fallthru
          _
      $region32: #{tpu_custom_call.1} parent=5 // pred_fallthru
        _
      %p190 = scmp.le.s32.totalorder 1, %s14
      %p191 = scmp.lt.s32.totalorder %s14, 3
      %p192 = pnand %p190, %p191
      %p193 = pneg %p192
      // Predicated region
      $region37: #{tpu_custom_call.1} parent=5 // pred_check
        _
      $region38: #{tpu_custom_call.1} parent=5 // pred_check_branch
        %195 = sbr.rel (%p192) target = $region40
      $region39: #{tpu_custom_call.1} parent=5 // pred_region
        %s196 = ssub.s32 %s14, 1
        %s197 = smul.u32 2, %s19
        %p198 = scmp.lt.s32.totalorder %s197, 3
        %s199 = scalar_select %p198, %s197, 3
        %s200 = smul.addr %s199, 4
        %s201 = scalar_lea.vmem %s0, %s200
        %p202 = pneg %p40
        %p203 = pneg %p37
        %p204 = pneg %p61
        %p205 = pneg %p58
        %p206 = pneg %p82
        %p207 = pneg %p79
        %p208 = pneg %p103
        %p209 = pneg %p100
        %p210 = pneg %p124
        %p211 = pneg %p121
        %p212 = pneg %p150
        %p213 = pneg %p147
        %s214 = sand.u32 %s137, 1
        %s215 = scalar_lea.sflag [#allocation3], %s214
        %s216 = sand.u32 %s137, 1
        %s217 = smul.addr %s216, 16
        %s218 = scalar_lea.vmem [#allocation2], %s217
        %s219 = smul.u32 2, %s19
        %p220 = scmp.lt.s32.totalorder %s219, 3
        %s221 = scalar_select %p220, %s219, 3
        %s222 = smul.addr %s221, 4
        %s223 = scalar_lea.vmem %s0, %s222
        %s224 = smul.u32 2, %s19
        %s225 = smul.u32 2, %s19
        %v227 = vld [vmem:[%s223] sm:$0xf]
        %v228 = vld [vmem:[%s223 + $0x4] sm:$0xf]
        %v229 = vld [vmem:[%s1] sm:$0xf]
        %v230 = vld [vmem:[%s1 + $0x4] sm:$0xf]
        %v231 = vld [vmem:[%s2] sm:$0xff]
        %v232 = vld [vmem:[%s2 + $0x8] sm:$0xff]
        %v235 = vunpack.c.l.b16 %v227
        %v236 = vunpack.c.l.b16 %v228
        %v237 = vpack.c.b16 %v236, %v235
        %v240 = vunpack.c.l.b16 %v229
        %v241 = vunpack.c.l.b16 %v230
        %v242 = vpack.c.b16 %v241, %v240
        %vm244 = vcmask 130048
        %v246 = vsel %vm244, %v237, 0
        %248 = vmatprep.subr.bf16.mxu0 0
        %249 = vmatpush1.bf16.msra.mxu0 %v242
        %250 = vmatprep.subr.bf16.mxu0 0
        %251 = vmatpush1.bf16.msra.mxu0 0
        %252 = vmatprep.subr.bf16.mxu0 0
        %253 = vmatpush1.bf16.msra.mxu0 0
        %254 = vmatprep.subr.bf16.mxu0 0
        %255 = vmatpush1.bf16.msra.mxu0 0
        %256 = vmatprep.subr.bf16.mxu0 0
        %257 = vmatpush1.bf16.msra.mxu0 0
        %258 = vmatprep.subr.bf16.mxu0 0
        %259 = vmatpush1.bf16.msra.mxu0 0
        %260 = vmatprep.subr.bf16.mxu0 0
        %261 = vmatpush1.bf16.msra.mxu0 0
        %262 = vmatprep.subr.bf16.mxu0 0
        %263 = vmatpush1.bf16.msra.mxu0 0
        %264 = vmatprep.subr.bf16.mxu0 0
        %265 = vmatpush1.bf16.msra.mxu0 0
        %266 = vmatprep.subr.bf16.mxu0 0
        %267 = vmatpush1.bf16.msra.mxu0 0
        %268 = vmatprep.subr.bf16.mxu0 0
        %269 = vmatpush1.bf16.msra.mxu0 0
        %270 = vmatprep.subr.bf16.mxu0 0
        %271 = vmatpush1.bf16.msra.mxu0 0
        %272 = vmatprep.subr.bf16.mxu0 0
        %273 = vmatpush1.bf16.msra.mxu0 0
        %274 = vmatprep.subr.bf16.mxu0 0
        %275 = vmatpush1.bf16.msra.mxu0 0
        %276 = vmatprep.subr.bf16.mxu0 0
        %277 = vmatpush1.bf16.msra.mxu0 0
        %278 = vmatprep.subr.bf16.mxu0 0
        %279 = vmatpush1.bf16.msra.mxu0 0
        %280 = vmatprep.mubr.bf16.mxu0 0
        %281 = vmatmul.mubr.bf16.gmra.mrb[0].mxu0 %v246
        %v282 = vpop.f32.mrb[0].mxu0
        %v283 = vadd.f32 %v231, %v282
        %v284 = vpop.f32.mrb[0].mxu0
        %v285 = vpop.f32.mrb[0].mxu0
        %v286 = vadd.f32 %v232, %v285
        %v287 = vpop.f32.mrb[0].mxu0
        %288 = vdwg.mxu0
        %289 = vadd.xlane.f32.xlu0 %v283
        %v290 = vpop.xlane.xlu0 %289
        %291 = vadd.xlane.f32.xlu0 %v286
        %v292 = vpop.xlane.xlu0 %291
        %v293 = vmul.f32 %v283, %v283
        %v294 = vmul.f32 %v286, %v286
        %295 = vadd.xlane.f32.xlu0 %v293
        %v296 = vpop.xlane.xlu0 %295
        %297 = vadd.xlane.f32.xlu0 %v294
        %v298 = vpop.xlane.xlu0 %297
        %v299 = vmul.f32 %v290, 0.03125
        %v300 = vmul.f32 %v292, 0.03125
        %v301 = vmul.f32 %v299, %v290
        %v302 = vmul.f32 %v300, %v292
        %v303 = vsub.f32 %v296, %v301
        %v304 = vsub.f32 %v298, %v302
        %v305 = vmul.f32 %v303, 0.032258064
        %v306 = vmul.f32 %v304, 0.032258064
        %v307 = vmax.f32 %v305, 0.0
        %v308 = vmax.f32 %v306, 0.0
        %v309 = vrsqrt.pop %v307
        %v310 = vmul.f32 %v307, %v309
        %vm311 = vcmp.eq.f32.partialorder %v307, inf
        %v312 = vsel %vm311, %v307, %v310
        %vm313 = vcmp.eq.f32.partialorder %v307, 0.0
        %v314 = vand.u32 %v307, 2147483648
        %v315 = vsel %vm313, %v314, %v312
        %v316 = vrsqrt.pop %v308
        %v317 = vmul.f32 %v308, %v316
        %vm318 = vcmp.eq.f32.partialorder %v308, inf
        %v319 = vsel %vm318, %v308, %v317
        %vm320 = vcmp.eq.f32.partialorder %v308, 0.0
        %v321 = vand.u32 %v308, 2147483648
        %v322 = vsel %vm320, %v321, %v319
        %v323 = vadd.f32 %v315, 1e-06
        %v324 = vadd.f32 %v322, 1e-06
        %v325 = vrcp.pop %v323
        %v326 = vrcp.pop %v324
        %v327 = vmul.f32 %v323, %v325
        %v328 = vmul.f32 %v324, %v326
        %v329 = vsub.f32 2.0, %v327
        %v330 = vsub.f32 2.0, %v328
        %v331 = vmul.f32 %v325, %v329
        %v332 = vmul.f32 %v326, %v330
        %v333 = vsub.f32 %v283, %v299
        %v334 = vsub.f32 %v286, %v300
        %v335 = vld [vmem:[%s3] sm:$0x1]
        %v337 = vlaneseq
        %v338 = vshrl.u32 %v337, 7
        %v339 = vsub.s32 0, %v338
        %v340 = vrot.slane %v335, %v339
        %v342 = vmul.f32 %v340, %v331
        %v343 = vmul.f32 %v340, %v332
        %v344 = vmul.f32 %v333, %v342
        %v345 = vmul.f32 %v334, %v343
        %v346 = vld [vmem:[%s4] sm:$0x1]
        %v348 = vlaneseq
        %v349 = vshrl.u32 %v348, 7
        %v350 = vsub.s32 0, %v349
        %v351 = vrot.slane %v346, %v350
        %v353 = vadd.f32 %v344, %v351
        %v354 = vadd.f32 %v345, %v351
        %355 = vst [vmem:[%s218] sm:$0xff] %v353
        %356 = vst [vmem:[%s218 + $0x8] sm:$0xff] %v354
        %s357 = sand.u32 %s137, 1
        %s358 = scalar_lea.sflag [#allocation3], %s357
        %s359 = sand.u32 %s137, 1
        %s360 = smul.addr %s359, 16
        %s361 = scalar_lea.vmem [#allocation2], %s360
        // Predicated region
        $region41: #{tpu_custom_call.1} parent=39 // pred_check
          %p362 = pneg %p147
        $region42: #{tpu_custom_call.1} parent=39 // pred_check_branch
          %364 = sbr.rel (%p362) target = $region44
        $region43: #{tpu_custom_call.1} parent=39 // pred_region
          %s365 = smul.u32 2, %s19
          %s367 = ssub.s32 256, 256
          %368 = vsyncadd %s358, %s367
          %s369 = smul.addr %s365, 128
          %s370 = scalar_lea.hbm %s5, %s369
          %s371 = sshll.u32 %s361, 4
          %s372 = int_to_ptr.vmem [resolvable:$true] %s371
          %377 = dma.vmem_to_hbm [thread:$0]  %s372, 256, %s370, %s358, 128, 128, 8
        $region44: #{tpu_custom_call.1} parent=39 // pred_fallthru
          _
      $region40: #{tpu_custom_call.1} parent=5 // pred_fallthru
        _
      %p378 = scmp.le.s32.totalorder 2, %s14
      // Predicated region
      $region45: #{tpu_custom_call.1} parent=5 // pred_check
        %p379 = pneg %p378
      $region46: #{tpu_custom_call.1} parent=5 // pred_check_branch
        %381 = sbr.rel (%p379) target = $region48
      $region47: #{tpu_custom_call.1} parent=5 // pred_region
        %s382 = ssub.s32 %s14, 2
        // Predicated region
        $region49: #{tpu_custom_call.1} parent=47 // pred_check
          %p383 = pneg %p153
        $region50: #{tpu_custom_call.1} parent=47 // pred_check_branch
          %385 = sbr.rel (%p383) target = $region52
        $region51: #{tpu_custom_call.1} parent=47 // pred_region
          %s386 = sand.u32 %s138, 1
          %s387 = scalar_lea.sflag [#allocation3], %s386
          %s388 = sand.u32 %s138, 1
          %s389 = smul.addr %s388, 16
          %s390 = scalar_lea.vmem [#allocation2], %s389
          %391 = dma.done %s387, 256
        $region52: #{tpu_custom_call.1} parent=47 // pred_fallthru
          _
      $region48: #{tpu_custom_call.1} parent=5 // pred_fallthru
        _
    $region6: #{tpu_custom_call.1} parent=1 // loop_footer
      %s18 = sadd.s32 1, %s14
    $region7: #{tpu_custom_call.1} parent=1 // loop_footer_branch
      %13 = sbr.rel target = $region3
    $region8: #{tpu_custom_call.1} parent=1 // loop_exit
      _
    %392 = vsyncpa [#allocation3], 1
    %s393 = scalar_lea.sflag [#allocation3], 1
    %394 = vsyncpa %s393, 1

// kernel: tpu_custom_call.1
$region0: #{tpu_custom_call.1}
  #allocation0 [shape = 'u32[]', space=smem, size = 0x4, offset = 0x4, fixed_abs, tag = 'smem constant byte address 0x4 - core index']
  #allocation1 [shape = 'u32[144,128]{1,0:T(1,128)}', space=vmem, size = 0x12000, scoped, tag = 'internal scratch']
  %s0 = inlined_call_operand.vmem [shape: bf16[32,16], index: 0, kind: input, shape index: {}]
  %s1 = inlined_call_operand.vmem [shape: bf16[16,128], index: 1, kind: input, shape index: {}]
  %s2 = inlined_call_operand.vmem [shape: f32[16,128], index: 2, kind: input, shape index: {}]
  %s3 = inlined_call_operand.vmem [shape: f32[1,128], index: 3, kind: input, shape index: {}]
  %s4 = inlined_call_operand.vmem [shape: f32[1,128], index: 4, kind: input, shape index: {}]
  %s5 = inlined_call_operand.hbm [shape: f32[32,128], index: 5, kind: output, shape index: {}]
  %s6 = sld [smem:[#allocation0]]
  $region53: #{tpu_custom_call.1} parent=0
    _
  %s8 = ssub.s32 1, %s6
  %s9 = scalar_select 0, %s8, %s6
  $region1: #{tpu_custom_call.1} parent=0
    #allocation2 [shape = 'u8[16384]{0}', space=vmem, size = 0x4000, scoped, tag = 'output window, operand 0']
    #allocation3 [shape = 's32[2]{0}', space=sflag, size = 0x8, scoped, tag = 'scoped memory for tpu_custom_call.1']
    %10 = vsyncpa [#allocation3], 0
    %s11 = scalar_lea.sflag [#allocation3], 1
    %12 = vsyncpa %s11, 0
    loop: start=0, step=1, limit=4
    $region2: #{tpu_custom_call.1} parent=1 // loop_pre_header
      _
    $region3: #{tpu_custom_call.1} parent=1 // loop_header
      %s14 = sphi 0, %s18
      %p15 = scmp.ge.s32.totalorder %s14, 4
      %s24 = sphi 0, %s26
      %s27 = sphi 0, %s24
      %s28 = sphi 0, %s27
      %s44 = sphi 0, %s28
      %s48 = sphi 0, %s48
      %s50 = sphi 0, %s48
      %s51 = sphi 0, %s50
      %s65 = sphi 0, %s51
      %s69 = sphi 0, %s69
      %s71 = sphi 0, %s69
      %s72 = sphi 0, %s71
      %s86 = sphi 0, %s72
      %s90 = sphi 0, %s90
      %s92 = sphi 0, %s90
      %s93 = sphi 0, %s92
      %s107 = sphi 0, %s93
      %s111 = sphi 0, %s111
      %s113 = sphi 0, %s111
      %s114 = sphi 0, %s113
      %s128 = sphi 0, %s114
      %s134 = sphi 0, %s136
      %s137 = sphi 0, %s134
      %s138 = sphi 0, %s137
      %s154 = sphi 0, %s138
    $region4: #{tpu_custom_call.1} parent=1 // loop_header_branch
      %17 = sbr.rel (%p15) target = $region8
    $region5: #{tpu_custom_call.1} parent=1 // loop_body
      %s19 = ssub.s32 %s14, 1
      %s20 = ssub.s32 %s14, 2
      %s21 = sadd.s32 %s14, 1
      %s22 = ssub.s32 %s14, %s21
      %p23 = scmp.eq.s32.totalorder %s22, 0
      %s25 = sadd.s32 %s24, 1
      %s26 = scalar_select %p23, %s24, %s25
      %p29 = pneg %p23
      %p30 = scmp.eq.s32.totalorder %s14, 1
      %p31 = por %p29, %p30
      %p32 = scmp.ne.s32.totalorder %s24, %s27
      %p33 = scmp.eq.s32.totalorder %s14, 0
      %p34 = por %p32, %p33
      %p35 = scmp.ne.s32.totalorder %s24, %s27
      %p36 = scmp.eq.s32.totalorder %s19, 1
      %p37 = por %p35, %p36
      %p38 = scmp.ne.s32.totalorder %s27, %s28
      %p39 = scmp.eq.s32.totalorder %s19, 0
      %p40 = por %p38, %p39
      %p41 = scmp.ne.s32.totalorder %s27, %s28
      %p42 = scmp.eq.s32.totalorder %s20, 1
      %p43 = por %p41, %p42
      %p45 = scmp.ne.s32.totalorder %s28, %s44
      %p46 = scmp.eq.s32.totalorder %s20, 0
      %p47 = por %p45, %p46
      %s49 = sadd.s32 %s48, 1
      %p52 = scmp.eq.s32.totalorder %s14, 1
      %p53 = scmp.ne.s32.totalorder %s48, %s50
      %p54 = scmp.eq.s32.totalorder %s14, 0
      %p55 = por %p53, %p54
      %p56 = scmp.ne.s32.totalorder %s48, %s50
      %p57 = scmp.eq.s32.totalorder %s19, 1
      %p58 = por %p56, %p57
      %p59 = scmp.ne.s32.totalorder %s50, %s51
      %p60 = scmp.eq.s32.totalorder %s19, 0
      %p61 = por %p59, %p60
      %p62 = scmp.ne.s32.totalorder %s50, %s51
      %p63 = scmp.eq.s32.totalorder %s20, 1
      %p64 = por %p62, %p63
      %p66 = scmp.ne.s32.totalorder %s51, %s65
      %p67 = scmp.eq.s32.totalorder %s20, 0
      %p68 = por %p66, %p67
      %s70 = sadd.s32 %s69, 1
      %p73 = scmp.eq.s32.totalorder %s14, 1
      %p74 = scmp.ne.s32.totalorder %s69, %s71
      %p75 = scmp.eq.s32.totalorder %s14, 0
      %p76 = por %p74, %p75
      %p77 = scmp.ne.s32.totalorder %s69, %s71
      %p78 = scmp.eq.s32.totalorder %s19, 1
      %p79 = por %p77, %p78
      %p80 = scmp.ne.s32.totalorder %s71, %s72
      %p81 = scmp.eq.s32.totalorder %s19, 0
      %p82 = por %p80, %p81
      %p83 = scmp.ne.s32.totalorder %s71, %s72
      %p84 = scmp.eq.s32.totalorder %s20, 1
      %p85 = por %p83, %p84
      %p87 = scmp.ne.s32.totalorder %s72, %s86
      %p88 = scmp.eq.s32.totalorder %s20, 0
      %p89 = por %p87, %p88
      %s91 = sadd.s32 %s90, 1
      %p94 = scmp.eq.s32.totalorder %s14, 1
      %p95 = scmp.ne.s32.totalorder %s90, %s92
      %p96 = scmp.eq.s32.totalorder %s14, 0
      %p97 = por %p95, %p96
      %p98 = scmp.ne.s32.totalorder %s90, %s92
      %p99 = scmp.eq.s32.totalorder %s19, 1
      %p100 = por %p98, %p99
      %p101 = scmp.ne.s32.totalorder %s92, %s93
      %p102 = scmp.eq.s32.totalorder %s19, 0
      %p103 = por %p101, %p102
      %p104 = scmp.ne.s32.totalorder %s92, %s93
      %p105 = scmp.eq.s32.totalorder %s20, 1
      %p106 = por %p104, %p105
      %p108 = scmp.ne.s32.totalorder %s93, %s107
      %p109 = scmp.eq.s32.totalorder %s20, 0
      %p110 = por %p108, %p109
      %s112 = sadd.s32 %s111, 1
      %p115 = scmp.eq.s32.totalorder %s14, 1
      %p116 = scmp.ne.s32.totalorder %s111, %s113
      %p117 = scmp.eq.s32.totalorder %s14, 0
      %p118 = por %p116, %p117
      %p119 = scmp.ne.s32.totalorder %s111, %s113
      %p120 = scmp.eq.s32.totalorder %s19, 1
      %p121 = por %p119, %p120
      %p122 = scmp.ne.s32.totalorder %s113, %s114
      %p123 = scmp.eq.s32.totalorder %s19, 0
      %p124 = por %p122, %p123
      %p125 = scmp.ne.s32.totalorder %s113, %s114
      %p126 = scmp.eq.s32.totalorder %s20, 1
      %p127 = por %p125, %p126
      %p129 = scmp.ne.s32.totalorder %s114, %s128
      %p130 = scmp.eq.s32.totalorder %s20, 0
      %p131 = por %p129, %p130
      %s132 = ssub.s32 %s14, %s21
      %p133 = scmp.eq.s32.totalorder %s132, 0
      %s135 = sadd.s32 %s134, 1
      %s136 = scalar_select %p133, %s134, %s135
      %p139 = pneg %p133
      %p140 = scmp.eq.s32.totalorder %s14, 1
      %p141 = por %p139, %p140
      %p142 = scmp.ne.s32.totalorder %s134, %s137
      %p143 = scmp.eq.s32.totalorder %s14, 0
      %p144 = por %p142, %p143
      %p145 = scmp.ne.s32.totalorder %s134, %s137
      %p146 = scmp.eq.s32.totalorder %s19, 1
      %p147 = por %p145, %p146
      %p148 = scmp.ne.s32.totalorder %s137, %s138
      %p149 = scmp.eq.s32.totalorder %s19, 0
      %p150 = por %p148, %p149
      %p151 = scmp.ne.s32.totalorder %s137, %s138
      %p152 = scmp.eq.s32.totalorder %s20, 1
      %p153 = por %p151, %p152
      %p155 = scmp.ne.s32.totalorder %s138, %s154
      %p156 = scmp.eq.s32.totalorder %s20, 0
      %p157 = por %p155, %p156
      %p158 = scmp.le.s32.totalorder 1, %s14
      %p159 = scmp.lt.s32.totalorder %s14, 3
      %p160 = pnand %p158, %p159
      %p161 = pneg %p160
      // Predicated region
      $region9: #{tpu_custom_call.1} parent=5 // pred_check
        _
      $region10: #{tpu_custom_call.1} parent=5 // pred_check_branch
        %163 = sbr.rel (%p160) target = $region12
      $region11: #{tpu_custom_call.1} parent=5 // pred_region
        %s164 = ssub.s32 %s14, 1
        // Predicated region
        $region13: #{tpu_custom_call.1} parent=11 // pred_check
          %p165 = pneg %p61
        $region14: #{tpu_custom_call.1} parent=11 // pred_check_branch
          %167 = sbr.rel (%p165) target = $region16
        $region15: #{tpu_custom_call.1} parent=11 // pred_region
          _
        $region16: #{tpu_custom_call.1} parent=11 // pred_fallthru
          _
        // Predicated region
        $region17: #{tpu_custom_call.1} parent=11 // pred_check
          %p168 = pneg %p82
        $region18: #{tpu_custom_call.1} parent=11 // pred_check_branch
          %170 = sbr.rel (%p168) target = $region20
        $region19: #{tpu_custom_call.1} parent=11 // pred_region
          _
        $region20: #{tpu_custom_call.1} parent=11 // pred_fallthru
          _
        // Predicated region
        $region21: #{tpu_custom_call.1} parent=11 // pred_check
          %p171 = pneg %p103
        $region22: #{tpu_custom_call.1} parent=11 // pred_check_branch
          %173 = sbr.rel (%p171) target = $region24
        $region23: #{tpu_custom_call.1} parent=11 // pred_region
          _
        $region24: #{tpu_custom_call.1} parent=11 // pred_fallthru
          _
        // Predicated region
        $region25: #{tpu_custom_call.1} parent=11 // pred_check
          %p174 = pneg %p124
        $region26: #{tpu_custom_call.1} parent=11 // pred_check_branch
          %176 = sbr.rel (%p174) target = $region28
        $region27: #{tpu_custom_call.1} parent=11 // pred_region
          _
        $region28: #{tpu_custom_call.1} parent=11 // pred_fallthru
          _
      $region12: #{tpu_custom_call.1} parent=5 // pred_fallthru
        _
      %p177 = scmp.lt.s32.totalorder %s14, 2
      // Predicated region
      $region29: #{tpu_custom_call.1} parent=5 // pred_check
        %p178 = pneg %p177
      $region30: #{tpu_custom_call.1} parent=5 // pred_check_branch
        %180 = sbr.rel (%p178) target = $region32
      $region31: #{tpu_custom_call.1} parent=5 // pred_region
        // Predicated region
        $region33: #{tpu_custom_call.1} parent=31 // pred_check
          %p181 = pneg %p34
        $region34: #{tpu_custom_call.1} parent=31 // pred_check_branch
          %183 = sbr.rel (%p181) target = $region36
        $region35: #{tpu_custom_call.1} parent=31 // pred_region
          %s184 = smul.u32 2, %s14
          %p185 = scmp.lt.s32.totalorder %s184, 3
          %s186 = scalar_select %p185, %s184, 3
          %s187 = smul.addr %s186, 4
          %s188 = scalar_lea.vmem %s0, %s187
          %s189 = smul.u32 2, %s14
        $region36: #{tpu_custom_call.1} parent=31 // pred_fallthru
          _
      $region32: #{tpu_custom_call.1} parent=5 // pred_fallthru
        _
      %p190 = scmp.le.s32.totalorder 1, %s14
      %p191 = scmp.lt.s32.totalorder %s14, 3
      %p192 = pnand %p190, %p191
      %p193 = pneg %p192
      // Predicated region
      $region37: #{tpu_custom_call.1} parent=5 // pred_check
        _
      $region38: #{tpu_custom_call.1} parent=5 // pred_check_branch
        %195 = sbr.rel (%p192) target = $region40
      $region39: #{tpu_custom_call.1} parent=5 // pred_region
        %s196 = ssub.s32 %s14, 1
        %s197 = smul.u32 2, %s19
        %p198 = scmp.lt.s32.totalorder %s197, 3
        %s199 = scalar_select %p198, %s197, 3
        %s200 = smul.addr %s199, 4
        %s201 = scalar_lea.vmem %s0, %s200
        %p202 = pneg %p40
        %p203 = pneg %p37
        %p204 = pneg %p61
        %p205 = pneg %p58
        %p206 = pneg %p82
        %p207 = pneg %p79
        %p208 = pneg %p103
        %p209 = pneg %p100
        %p210 = pneg %p124
        %p211 = pneg %p121
        %p212 = pneg %p150
        %p213 = pneg %p147
        %s214 = sand.u32 %s137, 1
        %s215 = scalar_lea.sflag [#allocation3], %s214
        %s216 = sand.u32 %s137, 1
        %s217 = smul.addr %s216, 16
        %s218 = scalar_lea.vmem [#allocation2], %s217
        %s219 = smul.u32 2, %s19
        %p220 = scmp.lt.s32.totalorder %s219, 3
        %s221 = scalar_select %p220, %s219, 3
        %s222 = smul.addr %s221, 4
        %s223 = scalar_lea.vmem %s0, %s222
        %s224 = smul.u32 2, %s19
        %s225 = smul.u32 2, %s19
        %v227 = vld [vmem:[%s223] sm:$0xf]
        %v228 = vld [vmem:[%s223 + $0x4] sm:$0xf]
        %v229 = vld [vmem:[%s1] sm:$0xf]
        %v230 = vld [vmem:[%s1 + $0x4] sm:$0xf]
        %v231 = vld [vmem:[%s2] sm:$0xff]
        %v232 = vld [vmem:[%s2 + $0x8] sm:$0xff]
        %v235 = vunpack.c.l.b16 %v227
        %v236 = vunpack.c.l.b16 %v228
        %v237 = vpack.c.b16 %v236, %v235
        %v240 = vunpack.c.l.b16 %v229
        %v241 = vunpack.c.l.b16 %v230
        %v242 = vpack.c.b16 %v241, %v240
        %vm244 = vcmask 130048
        %v246 = vsel %vm244, %v237, 0
        %248 = vmatprep.subr.bf16.mxu0 0
        %249 = vmatpush1.bf16.msra.mxu0 %v242
        %250 = vmatprep.subr.bf16.mxu0 0
        %251 = vmatpush1.bf16.msra.mxu0 0
        %252 = vmatprep.subr.bf16.mxu0 0
        %253 = vmatpush1.bf16.msra.mxu0 0
        %254 = vmatprep.subr.bf16.mxu0 0
        %255 = vmatpush1.bf16.msra.mxu0 0
        %256 = vmatprep.subr.bf16.mxu0 0
        %257 = vmatpush1.bf16.msra.mxu0 0
        %258 = vmatprep.subr.bf16.mxu0 0
        %259 = vmatpush1.bf16.msra.mxu0 0
        %260 = vmatprep.subr.bf16.mxu0 0
        %261 = vmatpush1.bf16.msra.mxu0 0
        %262 = vmatprep.subr.bf16.mxu0 0
        %263 = vmatpush1.bf16.msra.mxu0 0
        %264 = vmatprep.subr.bf16.mxu0 0
        %265 = vmatpush1.bf16.msra.mxu0 0
        %266 = vmatprep.subr.bf16.mxu0 0
        %267 = vmatpush1.bf16.msra.mxu0 0
        %268 = vmatprep.subr.bf16.mxu0 0
        %269 = vmatpush1.bf16.msra.mxu0 0
        %270 = vmatprep.subr.bf16.mxu0 0
        %271 = vmatpush1.bf16.msra.mxu0 0
        %272 = vmatprep.subr.bf16.mxu0 0
        %273 = vmatpush1.bf16.msra.mxu0 0
        %274 = vmatprep.subr.bf16.mxu0 0
        %275 = vmatpush1.bf16.msra.mxu0 0
        %276 = vmatprep.subr.bf16.mxu0 0
        %277 = vmatpush1.bf16.msra.mxu0 0
        %278 = vmatprep.subr.bf16.mxu0 0
        %279 = vmatpush1.bf16.msra.mxu0 0
        %280 = vmatprep.mubr.bf16.mxu0 0
        %281 = vmatmul.mubr.bf16.gmra.mrb[0].mxu0 %v246
        %v282 = vpop.f32.mrb[0].mxu0
        %v283 = vadd.f32 %v231, %v282
        %v284 = vpop.f32.mrb[0].mxu0
        %v285 = vpop.f32.mrb[0].mxu0
        %v286 = vadd.f32 %v232, %v285
        %v287 = vpop.f32.mrb[0].mxu0
        %288 = vdwg.mxu0
        %289 = vadd.xlane.f32.xlu0 %v283
        %v290 = vpop.xlane.xlu0 %289
        %291 = vadd.xlane.f32.xlu0 %v286
        %v292 = vpop.xlane.xlu0 %291
        %v293 = vmul.f32 %v283, %v283
        %v294 = vmul.f32 %v286, %v286
        %295 = vadd.xlane.f32.xlu0 %v293
        %v296 = vpop.xlane.xlu0 %295
        %297 = vadd.xlane.f32.xlu0 %v294
        %v298 = vpop.xlane.xlu0 %297
        %v299 = vmul.f32 %v290, 0.03125
        %v300 = vmul.f32 %v292, 0.03125
        %v301 = vmul.f32 %v299, %v290
        %v302 = vmul.f32 %v300, %v292
        %v303 = vsub.f32 %v296, %v301
        %v304 = vsub.f32 %v298, %v302
        %v305 = vmul.f32 %v303, 0.032258064
        %v306 = vmul.f32 %v304, 0.032258064
        %v307 = vmax.f32 %v305, 0.0
        %v308 = vmax.f32 %v306, 0.0
        %v309 = vrsqrt.pop %v307
        %v310 = vmul.f32 %v307, %v309
        %vm311 = vcmp.eq.f32.partialorder %v307, inf
        %v312 = vsel %vm311, %v307, %v310
        %vm313 = vcmp.eq.f32.partialorder %v307, 0.0
        %v314 = vand.u32 %v307, 2147483648
        %v315 = vsel %vm313, %v314, %v312
        %v316 = vrsqrt.pop %v308
        %v317 = vmul.f32 %v308, %v316
        %vm318 = vcmp.eq.f32.partialorder %v308, inf
        %v319 = vsel %vm318, %v308, %v317
        %vm320 = vcmp.eq.f32.partialorder %v308, 0.0
        %v321 = vand.u32 %v308, 2147483648
        %v322 = vsel %vm320, %v321, %v319
        %v323 = vadd.f32 %v315, 1e-06
        %v324 = vadd.f32 %v322, 1e-06
        %v325 = vrcp.pop %v323
        %v326 = vrcp.pop %v324
        %v327 = vmul.f32 %v323, %v325
        %v328 = vmul.f32 %v324, %v326
        %v329 = vsub.f32 2.0, %v327
        %v330 = vsub.f32 2.0, %v328
        %v331 = vmul.f32 %v325, %v329
        %v332 = vmul.f32 %v326, %v330
        %v333 = vsub.f32 %v283, %v299
        %v334 = vsub.f32 %v286, %v300
        %v335 = vld [vmem:[%s3] sm:$0x1]
        %v337 = vlaneseq
        %v338 = vshrl.u32 %v337, 7
        %v339 = vsub.s32 0, %v338
        %v340 = vrot.slane %v335, %v339
        %v342 = vmul.f32 %v340, %v331
        %v343 = vmul.f32 %v340, %v332
        %v344 = vmul.f32 %v333, %v342
        %v345 = vmul.f32 %v334, %v343
        %v346 = vld [vmem:[%s4] sm:$0x1]
        %v348 = vlaneseq
        %v349 = vshrl.u32 %v348, 7
        %v350 = vsub.s32 0, %v349
        %v351 = vrot.slane %v346, %v350
        %v353 = vadd.f32 %v344, %v351
        %v354 = vadd.f32 %v345, %v351
        %355 = vst [vmem:[%s218] sm:$0xff] %v353
        %356 = vst [vmem:[%s218 + $0x8] sm:$0xff] %v354
        %s357 = sand.u32 %s137, 1
        %s358 = scalar_lea.sflag [#allocation3], %s357
        %s359 = sand.u32 %s137, 1
        %s360 = smul.addr %s359, 16
        %s361 = scalar_lea.vmem [#allocation2], %s360
        // Predicated region
        $region41: #{tpu_custom_call.1} parent=39 // pred_check
          %p362 = pneg %p147
        $region42: #{tpu_custom_call.1} parent=39 // pred_check_branch
          %364 = sbr.rel (%p362) target = $region44
        $region43: #{tpu_custom_call.1} parent=39 // pred_region
          %s365 = smul.u32 2, %s19
          %s367 = ssub.s32 256, 256
          %368 = vsyncadd %s358, %s367
          %s369 = smul.addr %s365, 128
          %s370 = scalar_lea.hbm %s5, %s369
          %s371 = sshll.u32 %s361, 4
          %s372 = int_to_ptr.vmem [resolvable:$true] %s371
          %377 = dma.vmem_to_hbm [thread:$0]  %s372, 256, %s370, %s358, 128, 128, 8
        $region44: #{tpu_custom_call.1} parent=39 // pred_fallthru
          _
      $region40: #{tpu_custom_call.1} parent=5 // pred_fallthru
        _
      %p378 = scmp.le.s32.totalorder 2, %s14
      // Predicated region
      $region45: #{tpu_custom_call.1} parent=5 // pred_check
        %p379 = pneg %p378
      $region46: #{tpu_custom_call.1} parent=5 // pred_check_branch
        %381 = sbr.rel (%p379) target = $region48
      $region47: #{tpu_custom_call.1} parent=5 // pred_region
        %s382 = ssub.s32 %s14, 2
        // Predicated region
        $region49: #{tpu_custom_call.1} parent=47 // pred_check
          %p383 = pneg %p153
        $region50: #{tpu_custom_call.1} parent=47 // pred_check_branch
          %385 = sbr.rel (%p383) target = $region52
        $region51: #{tpu_custom_call.1} parent=47 // pred_region
          %s386 = sand.u32 %s138, 1
          %s387 = scalar_lea.sflag [#allocation3], %s386
          %s388 = sand.u32 %s138, 1
          %s389 = smul.addr %s388, 16
          %s390 = scalar_lea.vmem [#allocation2], %s389
          %391 = dma.done %s387, 256
        $region52: #{tpu_custom_call.1} parent=47 // pred_fallthru
          _
      $region48: #{tpu_custom_call.1} parent=5 // pred_fallthru
        _
    $region6: #{tpu_custom_call.1} parent=1 // loop_footer
      %s18 = sadd.s32 1, %s14
    $region7: #{tpu_custom_call.1} parent=1 // loop_footer_branch
      %13 = sbr.rel target = $region3
    $region8: #{tpu_custom_call.1} parent=1 // loop_exit
      _
    %392 = vsyncpa [#allocation3], 1
    %s393 = scalar_lea.sflag [#allocation3], 1
    %394 = vsyncpa %s393, 1

</llo_original>
